<compile_context>
chip_gen: v6e
topology: v6e:2x2x1
jax: 0.10.0
libtpu: 0.0.40
codegen_flags: <defaults>
</compile_context>

<pallas_src>
import math
import jax
import jax.numpy as jnp
from jax.experimental import pallas as pl
from jax.experimental.pallas import tpu as pltpu  # noqa: F401  (TPU backend)

HIDDEN = 128

# Weight-matrix storage dtype. float32 == exact module semantics.
# jnp.bfloat16 halves the dominant HBM weight bytes on v6e/v7x (math stays f32).
WEIGHT_DTYPE = jnp.float32


# ------------------------------- kernel ------------------------------------ #

def noisy_dqn_kernel(x_ref, w1_ref, wn1_ref, wn2_ref, vec_ref, out_ref):
    H = w1_ref.shape[1]    # hidden width (128)
    A = wn2_ref.shape[1]   # num_actions (unpadded)

    # Small per-feature vectors, packed as rows of one [12, H] array
    # (one DMA instead of eleven; static row slices are cheap).
    b1    = vec_ref[0:1, :]
    ein1  = vec_ref[1:2, :]
    eout1 = vec_ref[2:3, :]
    bmu1  = vec_ref[3:4, :]
    bsig1 = vec_ref[4:5, :]
    beps1 = vec_ref[5:6, :]
    ein2  = vec_ref[6:7, :]
    eout2 = vec_ref[7:8, 0:A]
    bmu2  = vec_ref[8:9, 0:A]
    bsig2 = vec_ref[9:10, 0:A]
    beps2 = vec_ref[10:11, 0:A]

    x = x_ref[...]

    # ----- layer 1: nn.Linear + ReLU -----
    h1 = jnp.dot(x, w1_ref[...].astype(jnp.float32),
                 preferred_element_type=jnp.float32) + b1
    h1 = jnp.maximum(h1, 0.0)

    # ----- layer 2: NoisyLinear (training mode) + ReLU -----
    # Rank-1 factorized noise, fused into a single K=2H matmul:
    #   h @ (Wmu + Wsig ⊙ (eps_in ⊗ eps_out)) = [h, h*eps_in] @ [[Wmu],[Wsig*eps_out]]
    wn1 = wn1_ref[...].astype(jnp.float32)                       # [2H, H]
    w2 = jnp.concatenate([wn1[0:H, :], wn1[H:2 * H, :] * eout1], axis=0)
    lhs2 = jnp.concatenate([h1, h1 * ein1], axis=-1)             # [B, 2H]
    h2 = jnp.dot(lhs2, w2, preferred_element_type=jnp.float32)
    h2 = jnp.maximum(h2 + bmu1 + bsig1 * beps1, 0.0)

    # ----- layer 3: NoisyLinear, no activation (unpadded [B, A] output) -----
    wn2 = wn2_ref[...].astype(jnp.float32)                       # [2H, A]
    w3 = jnp.concatenate([wn2[0:H, :], wn2[H:2 * H, :] * eout2], axis=0)
    lhs3 = jnp.concatenate([h2, h2 * ein2], axis=-1)             # [B, 2H]
    q = jnp.dot(lhs3, w3, preferred_element_type=jnp.float32)
    out_ref[...] = (q + bmu2 + bsig2 * beps2).astype(out_ref.dtype)


# ------------------------------- wrapper ------------------------------------ #

def noisy_dqn_forward(x, kp):
    """x: [B, obs_dim] float32. kp: packed kernel params. Returns [B, num_actions]."""
    B = x.shape[0]
    A = kp["wn2"].shape[1]

    args = (x, kp["w1"], kp["wn1"], kp["wn2"], kp["vec"])

    def full_spec(a):
        # Whole array as one VMEM block; index map captures a's rank per call
        # (no late-binding over a loop variable).
        return pl.BlockSpec(a.shape, lambda: (0,) * a.ndim)

    return pl.pallas_call(
        noisy_dqn_kernel,
        out_shape=jax.ShapeDtypeStruct((B, A), jnp.float32),
        grid=(),
        in_specs=[full_spec(a) for a in args],
        out_specs=pl.BlockSpec((B, A), lambda: (0, 0)),
    )(*args)


# --------------------------- parameter handling ----------------------------- #

def _scale_noise(key, size):
    # f(x) = sign(x) * sqrt(|x|)   (NoisyLinear._scale_noise)
    x = jax.random.normal(key, (size,), dtype=jnp.float32)
    return jnp.sign(x) * jnp.sqrt(jnp.abs(x))


def init_noisy_linear_raw(key, in_f, out_f, std_init=0.4):
    """NoisyLinear.reset_parameters() + reset_noise(), PyTorch layout
    (weight [out, in], vectors 1-D). bias_epsilon is an independent draw,
    exactly as in the reference module."""
    k_wmu, k_bmu, k_ein, k_eout, k_beps = jax.random.split(key, 5)
    mu_range = 1.0 / math.sqrt(in_f)
    return dict(
        wmu=jax.random.uniform(k_wmu, (out_f, in_f), jnp.float32, -mu_range, mu_range),
        wsig=jnp.full((out_f, in_f), std_init / math.sqrt(in_f), jnp.float32),
        bmu=jax.random.uniform(k_bmu, (out_f,), jnp.float32, -mu_range, mu_range),
        bsig=jnp.full((out_f,), std_init / math.sqrt(out_f), jnp.float32),
        ein=_scale_noise(k_ein, in_f),
        eout=_scale_noise(k_eout, out_f),
        beps=_scale_noise(k_beps, out_f),
    )


def init_raw_params(key, obs_dim, num_actions, hidden=HIDDEN):
    k_w, k_b, k_n1, k_n2 = jax.random.split(key, 4)
    bound = 1.0 / math.sqrt(obs_dim)                 # nn.Linear default init
    return dict(
        lin_w=jax.random.uniform(k_w, (hidden, obs_dim), jnp.float32, -bound, bound),
        lin_b=jax.random.uniform(k_b, (hidden,), jnp.float32, -bound, bound),
        n1=init_noisy_linear_raw(k_n1, hidden, hidden),
        n2=init_noisy_linear_raw(k_n2, hidden, num_actions),
    )


def pack_params(raw, hidden=HIDDEN, weight_dtype=WEIGHT_DTYPE):
    """Pack PyTorch-layout params into the 4 kernel operands (besides x)."""
    H = hidden
    n1, n2 = raw["n1"], raw["n2"]

    def pad_h(v):  # zero-pad a 1-D vector to length H (padded lanes never read)
        return jnp.pad(v, (0, H - v.shape[0]))

    vec = jnp.stack([
        raw["lin_b"],                  # 0: b1
        n1["ein"],                     # 1
        n1["eout"],                    # 2
        n1["bmu"],                     # 3
        n1["bsig"],                    # 4
        n1["beps"],                    # 5
        n2["ein"],                     # 6
        pad_h(n2["eout"]),             # 7
        pad_h(n2["bmu"]),              # 8
        pad_h(n2["bsig"]),             # 9
        pad_h(n2["beps"]),             # 10
        jnp.zeros((H,), jnp.float32),  # 11: pad row
    ], axis=0).astype(jnp.float32)

    return dict(
        w1=raw["lin_w"].T.astype(weight_dtype),                                      # [obs, H]
        wn1=jnp.concatenate([n1["wmu"].T, n1["wsig"].T], axis=0).astype(weight_dtype),  # [2H, H]
        wn2=jnp.concatenate([n2["wmu"].T, n2["wsig"].T], axis=0).astype(weight_dtype),  # [2H, A]
        vec=vec,                                                                     # [12, H]
    )


# ----------------------------- pure-JAX reference --------------------------- #

def reference_forward(x, raw, weight_dtype=WEIGHT_DTYPE):
    """PyTorch NoisyDQN.forward (training mode) with materialized noisy weights.
    Weight matrices are rounded to weight_dtype so the check also stays valid
    if bf16 storage is enabled."""
    def r(w):
        return w.astype(weight_dtype).astype(jnp.float32)

    n1, n2 = raw["n1"], raw["n2"]
    h1 = jnp.maximum(x @ r(raw["lin_w"]).T + raw["lin_b"], 0.0)

    w_n1 = r(n1["wmu"]) + r(n1["wsig"]) * jnp.outer(n1["eout"], n1["ein"])
    b_n1 = n1["bmu"] + n1["bsig"] * n1["beps"]
    h2 = jnp.maximum(h1 @ w_n1.T + b_n1, 0.0)

    w_n2 = r(n2["wmu"]) + r(n2["wsig"]) * jnp.outer(n2["eout"], n2["ein"])
    b_n2 = n2["bmu"] + n2["bsig"] * n2["beps"]
    return h2 @ w_n2.T + b_n2


if __name__ == "__main__":
    key = jax.random.PRNGKey(0)
    k_params, k_x = jax.random.split(key)

    batch, obs_dim, num_actions = 2, 16, 4
    raw = init_raw_params(k_params, obs_dim, num_actions, hidden=HIDDEN)
    kp = pack_params(raw)
    x = jax.random.normal(k_x, (batch, obs_dim), dtype=jnp.float32)

    q = noisy_dqn_forward(x, kp)
    q = jax.block_until_ready(q)

    q_ref = reference_forward(x, raw)
    assert q.shape == (batch, num_actions), q.shape
    err = float(jnp.max(jnp.abs(q - q_ref)))
    assert jnp.allclose(q, q_ref, atol=1e-4, rtol=1e-4), f"mismatch vs reference: {err}"

    print("KERNEL_OK")
</pallas_src>

<mosaic_0001>
module attributes {stable_mosaic.version = 11 : i64} {
  func.func @noisy_dqn_kernel(%arg0: memref<2x16xf32, #tpu.memory_space<vmem>>, %arg1: memref<16x128xf32, #tpu.memory_space<vmem>>, %arg2: memref<256x128xf32, #tpu.memory_space<vmem>>, %arg3: memref<256x4xf32, #tpu.memory_space<vmem>>, %arg4: memref<12x128xf32, #tpu.memory_space<vmem>>, %arg5: memref<2x4xf32, #tpu.memory_space<vmem>>) attributes {dimension_semantics = [], scalar_prefetch = 0 : i64, scratch_operands = 0 : i64, tpu.core_type = #tpu.core_type<tc>} {
    %c0 = arith.constant 0 : index
    %c0_0 = arith.constant 0 : index
    %0 = vector.load %arg4[%c0, %c0_0] : memref<12x128xf32, #tpu.memory_space<vmem>>, vector<1x128xf32>
    %c1 = arith.constant 1 : index
    %c0_1 = arith.constant 0 : index
    %1 = vector.load %arg4[%c1, %c0_1] : memref<12x128xf32, #tpu.memory_space<vmem>>, vector<1x128xf32>
    %c2 = arith.constant 2 : index
    %c0_2 = arith.constant 0 : index
    %2 = vector.load %arg4[%c2, %c0_2] : memref<12x128xf32, #tpu.memory_space<vmem>>, vector<1x128xf32>
    %c3 = arith.constant 3 : index
    %c0_3 = arith.constant 0 : index
    %3 = vector.load %arg4[%c3, %c0_3] : memref<12x128xf32, #tpu.memory_space<vmem>>, vector<1x128xf32>
    %c4 = arith.constant 4 : index
    %c0_4 = arith.constant 0 : index
    %4 = vector.load %arg4[%c4, %c0_4] : memref<12x128xf32, #tpu.memory_space<vmem>>, vector<1x128xf32>
    %c5 = arith.constant 5 : index
    %c0_5 = arith.constant 0 : index
    %5 = vector.load %arg4[%c5, %c0_5] : memref<12x128xf32, #tpu.memory_space<vmem>>, vector<1x128xf32>
    %c6 = arith.constant 6 : index
    %c0_6 = arith.constant 0 : index
    %6 = vector.load %arg4[%c6, %c0_6] : memref<12x128xf32, #tpu.memory_space<vmem>>, vector<1x128xf32>
    %c7 = arith.constant 7 : index
    %c0_7 = arith.constant 0 : index
    %7 = vector.load %arg4[%c7, %c0_7] : memref<12x128xf32, #tpu.memory_space<vmem>>, vector<1x4xf32>
    %c8 = arith.constant 8 : index
    %c0_8 = arith.constant 0 : index
    %8 = vector.load %arg4[%c8, %c0_8] : memref<12x128xf32, #tpu.memory_space<vmem>>, vector<1x4xf32>
    %c9 = arith.constant 9 : index
    %c0_9 = arith.constant 0 : index
    %9 = vector.load %arg4[%c9, %c0_9] : memref<12x128xf32, #tpu.memory_space<vmem>>, vector<1x4xf32>
    %c10 = arith.constant 10 : index
    %c0_10 = arith.constant 0 : index
    %10 = vector.load %arg4[%c10, %c0_10] : memref<12x128xf32, #tpu.memory_space<vmem>>, vector<1x4xf32>
    %c0_11 = arith.constant 0 : index
    %c0_12 = arith.constant 0 : index
    %11 = vector.load %arg0[%c0_11, %c0_12] : memref<2x16xf32, #tpu.memory_space<vmem>>, vector<2x16xf32>
    %c0_13 = arith.constant 0 : index
    %c0_14 = arith.constant 0 : index
    %12 = vector.load %arg1[%c0_13, %c0_14] : memref<16x128xf32, #tpu.memory_space<vmem>>, vector<16x128xf32>
    %cst = arith.constant dense<0.000000e+00> : vector<2x128xf32>
    %13 = tpu.matmul %11, %12, %cst {dimension_numbers = #tpu.dot_dimension_numbers<[1], [0], [0], [1], [0, 0, 1, 1], [], []>} : vector<2x16xf32>, vector<16x128xf32>, vector<2x128xf32> -> vector<2x128xf32>
    %14 = vector.broadcast %0 : vector<1x128xf32> to vector<2x128xf32>
    %15 = arith.addf %13, %14 : vector<2x128xf32>
    %cst_15 = arith.constant 0.000000e+00 : f32
    %16 = vector.broadcast %cst_15 : f32 to vector<2x128xf32>
    %17 = arith.maximumf %15, %16 : vector<2x128xf32>
    %c0_16 = arith.constant 0 : index
    %c0_17 = arith.constant 0 : index
    %18 = vector.load %arg2[%c0_16, %c0_17] : memref<256x128xf32, #tpu.memory_space<vmem>>, vector<256x128xf32>
    %19 = vector.extract_strided_slice %18 {offsets = [0, 0], sizes = [128, 128], strides = [1, 1]} : vector<256x128xf32> to vector<128x128xf32>
    %20 = vector.extract_strided_slice %18 {offsets = [128, 0], sizes = [128, 128], strides = [1, 1]} : vector<256x128xf32> to vector<128x128xf32>
    %21 = vector.broadcast %2 : vector<1x128xf32> to vector<128x128xf32>
    %22 = arith.mulf %20, %21 : vector<128x128xf32>
    %23 = tpu.concatenate %19, %22 in 0 : vector<128x128xf32>, vector<128x128xf32> -> vector<256x128xf32>
    %24 = vector.broadcast %1 : vector<1x128xf32> to vector<2x128xf32>
    %25 = arith.mulf %17, %24 : vector<2x128xf32>
    %26 = tpu.concatenate %17, %25 in 1 : vector<2x128xf32>, vector<2x128xf32> -> vector<2x256xf32>
    %cst_18 = arith.constant dense<0.000000e+00> : vector<2x128xf32>
    %27 = tpu.matmul %26, %23, %cst_18 {dimension_numbers = #tpu.dot_dimension_numbers<[1], [0], [0], [1], [0, 0, 1, 1], [], []>} : vector<2x256xf32>, vector<256x128xf32>, vector<2x128xf32> -> vector<2x128xf32>
    %28 = vector.broadcast %3 : vector<1x128xf32> to vector<2x128xf32>
    %29 = arith.addf %27, %28 : vector<2x128xf32>
    %30 = arith.mulf %4, %5 : vector<1x128xf32>
    %31 = vector.broadcast %30 : vector<1x128xf32> to vector<2x128xf32>
    %32 = arith.addf %29, %31 : vector<2x128xf32>
    %cst_19 = arith.constant 0.000000e+00 : f32
    %33 = vector.broadcast %cst_19 : f32 to vector<2x128xf32>
    %34 = arith.maximumf %32, %33 : vector<2x128xf32>
    %c0_20 = arith.constant 0 : index
    %c0_21 = arith.constant 0 : index
    %35 = vector.load %arg3[%c0_20, %c0_21] : memref<256x4xf32, #tpu.memory_space<vmem>>, vector<256x4xf32>
    %36 = vector.extract_strided_slice %35 {offsets = [0, 0], sizes = [128, 4], strides = [1, 1]} : vector<256x4xf32> to vector<128x4xf32>
    %37 = vector.extract_strided_slice %35 {offsets = [128, 0], sizes = [128, 4], strides = [1, 1]} : vector<256x4xf32> to vector<128x4xf32>
    %38 = vector.broadcast %7 : vector<1x4xf32> to vector<128x4xf32>
    %39 = arith.mulf %37, %38 : vector<128x4xf32>
    %40 = tpu.concatenate %36, %39 in 0 : vector<128x4xf32>, vector<128x4xf32> -> vector<256x4xf32>
    %41 = vector.broadcast %6 : vector<1x128xf32> to vector<2x128xf32>
    %42 = arith.mulf %34, %41 : vector<2x128xf32>
    %43 = tpu.concatenate %34, %42 in 1 : vector<2x128xf32>, vector<2x128xf32> -> vector<2x256xf32>
    %cst_22 = arith.constant dense<0.000000e+00> : vector<2x4xf32>
    %44 = tpu.matmul %43, %40, %cst_22 {dimension_numbers = #tpu.dot_dimension_numbers<[1], [0], [0], [1], [0, 0, 1, 1], [], []>} : vector<2x256xf32>, vector<256x4xf32>, vector<2x4xf32> -> vector<2x4xf32>
    %45 = vector.broadcast %8 : vector<1x4xf32> to vector<2x4xf32>
    %46 = arith.addf %44, %45 : vector<2x4xf32>
    %47 = arith.mulf %9, %10 : vector<1x4xf32>
    %48 = vector.broadcast %47 : vector<1x4xf32> to vector<2x4xf32>
    %49 = arith.addf %46, %48 : vector<2x4xf32>
    %c0_23 = arith.constant 0 : index
    %c0_24 = arith.constant 0 : index
    %50 = vector.load %arg5[%c0_23, %c0_24] : memref<2x4xf32, #tpu.memory_space<vmem>>, vector<2x4xf32>
    tpu.vector_store %arg5[%c0_23, %c0_24], %49 {strides = array<i32>} : memref<2x4xf32, #tpu.memory_space<vmem>>, vector<2x4xf32>,
    return
  }
}

</mosaic_0001>

<llo_original>
// kernel: tpu_custom_call.1
$region0: #{tpu_custom_call.1}
  #allocation0 [shape = 'u32[]', space=smem, size = 0x4, offset = 0x4, fixed_abs, tag = 'smem constant byte address 0x4 - core index']
  #allocation1 [shape = 'u32[144,128]{1,0:T(1,128)}', space=vmem, size = 0x12000, scoped, tag = 'internal scratch']
  %s0 = inlined_call_operand.vmem [shape: f32[2,16], index: 0, kind: input, shape index: {}]
  %s1 = inlined_call_operand.hbm [shape: f32[16,128], index: 1, kind: input, shape index: {}]
  %s2 = inlined_call_operand.vmem [shape: f32[256,128], index: 2, kind: input, shape index: {}]
  %s3 = inlined_call_operand.vmem [shape: f32[256,4], index: 3, kind: input, shape index: {}]
  %s4 = inlined_call_operand.hbm [shape: f32[12,128], index: 4, kind: input, shape index: {}]
  %s5 = inlined_call_operand.hbm [shape: f32[2,4], index: 5, kind: output, shape index: {}]
  %s6 = sld [smem:[#allocation0]]
  $region38: #{tpu_custom_call.1} parent=0
    _
  %s8 = ssub.s32 1, %s6
  %s9 = scalar_select 0, %s8, %s6
  $region1: #{tpu_custom_call.1} parent=0
    #allocation2 [shape = 'u8[8192]{0}', space=vmem, size = 0x2000, scoped, tag = 'input window, operand 1, single buffered']
    #allocation3 [shape = 's32[1]{0}', space=sflag, size = 0x4, scoped, tag = 'scoped memory for tpu_custom_call.1']
    #allocation4 [shape = 's32[1]{0}', space=sflag, size = 0x4, scoped, tag = 'scoped memory for tpu_custom_call.1']
    #allocation5 [shape = 'u8[8192]{0}', space=vmem, size = 0x2000, scoped, tag = 'input window, operand 4, single buffered']
    #allocation6 [shape = 's32[1]{0}', space=sflag, size = 0x4, scoped, tag = 'scoped memory for tpu_custom_call.1']
    #allocation7 [shape = 'u8[1024]{0}', space=vmem, size = 0x400, scoped, tag = 'output window, operand 0, single buffered']
    %10 = vsyncpa [#allocation3], 0
    %11 = vsyncpa [#allocation6], 0
    %12 = vsyncpa [#allocation4], 0
    // Predicated region
    $region2: #{tpu_custom_call.1} parent=1 // pred_check
      _
    $region3: #{tpu_custom_call.1} parent=1 // pred_check_branch
      %14 = sbr.rel (0) target = $region5
    $region4: #{tpu_custom_call.1} parent=1 // pred_region
      _
    $region5: #{tpu_custom_call.1} parent=1 // pred_fallthru
      _
    // Predicated region
    $region6: #{tpu_custom_call.1} parent=1 // pred_check
      _
    $region7: #{tpu_custom_call.1} parent=1 // pred_check_branch
      %16 = sbr.rel (0) target = $region9
    $region8: #{tpu_custom_call.1} parent=1 // pred_region
      %s18 = ssub.s32 256, 256
      %19 = vsyncadd [#allocation3], %s18
      %s20 = sshll.u32 [#allocation2], 4
      %s21 = int_to_ptr.vmem [resolvable:$true] %s20
      %26 = dma.hbm_to_vmem [thread:$0]  %s1, 256, %s21, [#allocation3], 128, 128, 8
    $region9: #{tpu_custom_call.1} parent=1 // pred_fallthru
      _
    // Predicated region
    $region10: #{tpu_custom_call.1} parent=1 // pred_check
      _
    $region11: #{tpu_custom_call.1} parent=1 // pred_check_branch
      %28 = sbr.rel (0) target = $region13
    $region12: #{tpu_custom_call.1} parent=1 // pred_region
      _
    $region13: #{tpu_custom_call.1} parent=1 // pred_fallthru
      _
    // Predicated region
    $region14: #{tpu_custom_call.1} parent=1 // pred_check
      _
    $region15: #{tpu_custom_call.1} parent=1 // pred_check_branch
      %30 = sbr.rel (0) target = $region17
    $region16: #{tpu_custom_call.1} parent=1 // pred_region
      _
    $region17: #{tpu_custom_call.1} parent=1 // pred_fallthru
      _
    // Predicated region
    $region18: #{tpu_custom_call.1} parent=1 // pred_check
      _
    $region19: #{tpu_custom_call.1} parent=1 // pred_check_branch
      %32 = sbr.rel (0) target = $region21
    $region20: #{tpu_custom_call.1} parent=1 // pred_region
      %s34 = ssub.s32 256, 256
      %35 = vsyncadd [#allocation6], %s34
      %s36 = sshll.u32 [#allocation5], 4
      %s37 = int_to_ptr.vmem [resolvable:$true] %s36
      %42 = dma.hbm_to_vmem [thread:$0]  %s4, 256, %s37, [#allocation6], 128, 128, 8
    $region21: #{tpu_custom_call.1} parent=1 // pred_fallthru
      _
    // Predicated region
    $region22: #{tpu_custom_call.1} parent=1 // pred_check
      _
    $region23: #{tpu_custom_call.1} parent=1 // pred_check_branch
      %44 = sbr.rel (0) target = $region25
    $region24: #{tpu_custom_call.1} parent=1 // pred_region
      %45 = dma.done [#allocation3], 256
    $region25: #{tpu_custom_call.1} parent=1 // pred_fallthru
      _
    // Predicated region
    $region26: #{tpu_custom_call.1} parent=1 // pred_check
      _
    $region27: #{tpu_custom_call.1} parent=1 // pred_check_branch
      %47 = sbr.rel (0) target = $region29
    $region28: #{tpu_custom_call.1} parent=1 // pred_region
      %48 = dma.done [#allocation6], 256
    $region29: #{tpu_custom_call.1} parent=1 // pred_fallthru
      _
    %v49 = vld [vmem:[#allocation5] sm:$0x1]
    %v50 = vld [vmem:[#allocation5 + $0x1] sm:$0x1]
    %v51 = vld [vmem:[#allocation5 + $0x2] sm:$0x1]
    %v52 = vld [vmem:[#allocation5 + $0x3] sm:$0x1]
    %v53 = vld [vmem:[#allocation5 + $0x4] sm:$0x1]
    %v54 = vld [vmem:[#allocation5 + $0x5] sm:$0x1]
    %v55 = vld [vmem:[#allocation5 + $0x6] sm:$0x1]
    %v56 = vld [vmem:[#allocation5 + $0x7] sm:$0x1]
    %v57 = vld [vmem:[#allocation5 + $0x8] sm:$0x1]
    %v58 = vld [vmem:[#allocation5 + $0x9] sm:$0x1]
    %v59 = vld [vmem:[#allocation5 + $0xa] sm:$0x1]
    %v60 = vld [vmem:[%s0] sm:$0x3]
    %v61 = vld [vmem:[#allocation2] sm:$0xff]
    %v62 = vld [vmem:[#allocation2 + $0x8] sm:$0xff]
    %v63 = vlaneseq
    %v64 = vshrl.u32 %v63, 7
    %v65 = vsub.s32 0, %v64
    %v66 = vrot.slane %v49, %v65
    %vm67 = vcmask 130048
    %v69 = vsel %vm67, %v60, 0
    %71 = vmatprep.subr.mxu0 0.0
    %72 = vmatpush1.msra.mxu0 0.0
    %73 = vmatprep.subr.mxu0 0.0
    %74 = vmatpush1.msra.mxu0 0.0
    %75 = vmatprep.subr.mxu0 0.0
    %76 = vmatpush1.msra.mxu0 0.0
    %77 = vmatprep.subr.mxu0 0.0
    %78 = vmatpush1.msra.mxu0 0.0
    %79 = vmatprep.subr.mxu0 0.0
    %80 = vmatpush1.msra.mxu0 0.0
    %81 = vmatprep.subr.mxu0 0.0
    %82 = vmatpush1.msra.mxu0 0.0
    %83 = vmatprep.subr.mxu0 0.0
    %84 = vmatpush1.msra.mxu0 0.0
    %85 = vmatprep.subr.mxu0 0.0
    %86 = vmatpush1.msra.mxu0 0.0
    %87 = vmatprep.subr.mxu0 0.0
    %88 = vmatpush1.msra.mxu0 0.0
    %89 = vmatprep.subr.mxu0 0.0
    %90 = vmatpush1.msra.mxu0 0.0
    %91 = vmatprep.subr.mxu0 0.0
    %92 = vmatpush1.msra.mxu0 0.0
    %93 = vmatprep.subr.mxu0 0.0
    %94 = vmatpush1.msra.mxu0 0.0
    %95 = vmatprep.subr.mxu0 0.0
    %96 = vmatpush1.msra.mxu0 0.0
    %97 = vmatprep.subr.mxu0 0.0
    %98 = vmatpush1.msra.mxu0 0.0
    %99 = vmatprep.subr.mxu0 0.0
    %100 = vmatpush1.msra.mxu0 %v62
    %101 = vmatprep.subr.mxu0 0.0
    %102 = vmatpush1.msra.mxu0 %v61
    %103 = vmatprep.subr.mxu0 0.0
    %104 = vmatpush2.msra.mxu0 0.0
    %105 = vmatprep.subr.mxu0 0.0
    %106 = vmatpush2.msra.mxu0 0.0
    %107 = vmatprep.subr.mxu0 0.0
    %108 = vmatpush2.msra.mxu0 0.0
    %109 = vmatprep.subr.mxu0 0.0
    %110 = vmatpush2.msra.mxu0 0.0
    %111 = vmatprep.subr.mxu0 0.0
    %112 = vmatpush2.msra.mxu0 0.0
    %113 = vmatprep.subr.mxu0 0.0
    %114 = vmatpush2.msra.mxu0 0.0
    %115 = vmatprep.subr.mxu0 0.0
    %116 = vmatpush2.msra.mxu0 0.0
    %117 = vmatprep.subr.mxu0 0.0
    %118 = vmatpush2.msra.mxu0 0.0
    %119 = vmatprep.subr.mxu0 0.0
    %120 = vmatpush2.msra.mxu0 0.0
    %121 = vmatprep.subr.mxu0 0.0
    %122 = vmatpush2.msra.mxu0 0.0
    %123 = vmatprep.subr.mxu0 0.0
    %124 = vmatpush2.msra.mxu0 0.0
    %125 = vmatprep.subr.mxu0 0.0
    %126 = vmatpush2.msra.mxu0 0.0
    %127 = vmatprep.subr.mxu0 0.0
    %128 = vmatpush2.msra.mxu0 0.0
    %129 = vmatprep.subr.mxu0 0.0
    %130 = vmatpush2.msra.mxu0 0.0
    %131 = vmatprep.subr.mxu0 0.0
    %132 = vmatpush2.msra.mxu0 0.0
    %133 = vmatprep.subr.mxu0 0.0
    %134 = vmatpush2.msra.mxu0 0.0
    %135 = vmatprep.mubr.f32.mxu0 0.0
    %136 = vmatmul.mubr.f32.gmra.mxu0 %v69
    %v137 = vpop.f32.mrf.mxu0
    %v138 = vadd.f32 %v66, %v137
    %v139 = vpop.f32.mrf.mxu0
    %140 = vdwg.mxu0
    %v141 = vmax.f32 %v138, 0.0
    %v142 = vld [vmem:[%s2] sm:$0xff]
    %v143 = vld [vmem:[%s2 + $0x8] sm:$0xff]
    %v144 = vld [vmem:[%s2 + $0x10] sm:$0xff]
    %v145 = vld [vmem:[%s2 + $0x18] sm:$0xff]
    %v146 = vld [vmem:[%s2 + $0x20] sm:$0xff]
    %v147 = vld [vmem:[%s2 + $0x28] sm:$0xff]
    %v148 = vld [vmem:[%s2 + $0x30] sm:$0xff]
    %v149 = vld [vmem:[%s2 + $0x38] sm:$0xff]
    %v150 = vld [vmem:[%s2 + $0x40] sm:$0xff]
    %v151 = vld [vmem:[%s2 + $0x48] sm:$0xff]
    %v152 = vld [vmem:[%s2 + $0x50] sm:$0xff]
    %v153 = vld [vmem:[%s2 + $0x58] sm:$0xff]
    %v154 = vld [vmem:[%s2 + $0x60] sm:$0xff]
    %v155 = vld [vmem:[%s2 + $0x68] sm:$0xff]
    %v156 = vld [vmem:[%s2 + $0x70] sm:$0xff]
    %v157 = vld [vmem:[%s2 + $0x78] sm:$0xff]
    %v158 = vld [vmem:[%s2 + $0x80] sm:$0xff]
    %v159 = vld [vmem:[%s2 + $0x88] sm:$0xff]
    %v160 = vld [vmem:[%s2 + $0x90] sm:$0xff]
    %v161 = vld [vmem:[%s2 + $0x98] sm:$0xff]
    %v162 = vld [vmem:[%s2 + $0xa0] sm:$0xff]
    %v163 = vld [vmem:[%s2 + $0xa8] sm:$0xff]
    %v164 = vld [vmem:[%s2 + $0xb0] sm:$0xff]
    %v165 = vld [vmem:[%s2 + $0xb8] sm:$0xff]
    %v166 = vld [vmem:[%s2 + $0xc0] sm:$0xff]
    %v167 = vld [vmem:[%s2 + $0xc8] sm:$0xff]
    %v168 = vld [vmem:[%s2 + $0xd0] sm:$0xff]
    %v169 = vld [vmem:[%s2 + $0xd8] sm:$0xff]
    %v170 = vld [vmem:[%s2 + $0xe0] sm:$0xff]
    %v171 = vld [vmem:[%s2 + $0xe8] sm:$0xff]
    %v172 = vld [vmem:[%s2 + $0xf0] sm:$0xff]
    %v173 = vld [vmem:[%s2 + $0xf8] sm:$0xff]
    %v174 = vlaneseq
    %v175 = vshrl.u32 %v174, 7
    %v176 = vsub.s32 0, %v175
    %v177 = vrot.slane %v51, %v176
    %v178 = vmul.f32 %v158, %v177
    %v179 = vmul.f32 %v159, %v177
    %v180 = vmul.f32 %v160, %v177
    %v181 = vmul.f32 %v161, %v177
    %v182 = vmul.f32 %v162, %v177
    %v183 = vmul.f32 %v163, %v177
    %v184 = vmul.f32 %v164, %v177
    %v185 = vmul.f32 %v165, %v177
    %v186 = vmul.f32 %v166, %v177
    %v187 = vmul.f32 %v167, %v177
    %v188 = vmul.f32 %v168, %v177
    %v189 = vmul.f32 %v169, %v177
    %v190 = vmul.f32 %v170, %v177
    %v191 = vmul.f32 %v171, %v177
    %v192 = vmul.f32 %v172, %v177
    %v193 = vmul.f32 %v173, %v177
    %v194 = vlaneseq
    %v195 = vshrl.u32 %v194, 7
    %v196 = vsub.s32 0, %v195
    %v197 = vrot.slane %v50, %v196
    %v198 = vmul.f32 %v141, %v197
    %v199 = vlaneseq
    %v200 = vshrl.u32 %v199, 7
    %v201 = vsub.s32 0, %v200
    %v202 = vrot.slane %v52, %v201
    %203 = vmatprep.subr.mxu0 0.0
    %204 = vmatpush1.msra.mxu0 %v157
    %205 = vmatprep.subr.mxu0 0.0
    %206 = vmatpush1.msra.mxu0 %v156
    %207 = vmatprep.subr.mxu0 0.0
    %208 = vmatpush1.msra.mxu0 %v155
    %209 = vmatprep.subr.mxu0 0.0
    %210 = vmatpush1.msra.mxu0 %v154
    %211 = vmatprep.subr.mxu0 0.0
    %212 = vmatpush1.msra.mxu0 %v153
    %213 = vmatprep.subr.mxu0 0.0
    %214 = vmatpush1.msra.mxu0 %v152
    %215 = vmatprep.subr.mxu0 0.0
    %216 = vmatpush1.msra.mxu0 %v151
    %217 = vmatprep.subr.mxu0 0.0
    %218 = vmatpush1.msra.mxu0 %v150
    %219 = vmatprep.subr.mxu0 0.0
    %220 = vmatpush1.msra.mxu0 %v149
    %221 = vmatprep.subr.mxu0 0.0
    %222 = vmatpush1.msra.mxu0 %v148
    %223 = vmatprep.subr.mxu0 0.0
    %224 = vmatpush1.msra.mxu0 %v147
    %225 = vmatprep.subr.mxu0 0.0
    %226 = vmatpush1.msra.mxu0 %v146
    %227 = vmatprep.subr.mxu0 0.0
    %228 = vmatpush1.msra.mxu0 %v145
    %229 = vmatprep.subr.mxu0 0.0
    %230 = vmatpush1.msra.mxu0 %v144
    %231 = vmatprep.subr.mxu0 0.0
    %232 = vmatpush1.msra.mxu0 %v143
    %233 = vmatprep.subr.mxu0 0.0
    %234 = vmatpush1.msra.mxu0 %v142
    %235 = vmatprep.subr.mxu0 0.0
    %236 = vmatpush2.msra.mxu0 %v193
    %237 = vmatprep.subr.mxu0 0.0
    %238 = vmatpush2.msra.mxu0 %v192
    %239 = vmatprep.subr.mxu0 0.0
    %240 = vmatpush2.msra.mxu0 %v191
    %241 = vmatprep.subr.mxu0 0.0
    %242 = vmatpush2.msra.mxu0 %v190
    %243 = vmatprep.subr.mxu0 0.0
    %244 = vmatpush2.msra.mxu0 %v189
    %245 = vmatprep.subr.mxu0 0.0
    %246 = vmatpush2.msra.mxu0 %v188
    %247 = vmatprep.subr.mxu0 0.0
    %248 = vmatpush2.msra.mxu0 %v187
    %249 = vmatprep.subr.mxu0 0.0
    %250 = vmatpush2.msra.mxu0 %v186
    %251 = vmatprep.subr.mxu0 0.0
    %252 = vmatpush2.msra.mxu0 %v185
    %253 = vmatprep.subr.mxu0 0.0
    %254 = vmatpush2.msra.mxu0 %v184
    %255 = vmatprep.subr.mxu0 0.0
    %256 = vmatpush2.msra.mxu0 %v183
    %257 = vmatprep.subr.mxu0 0.0
    %258 = vmatpush2.msra.mxu0 %v182
    %259 = vmatprep.subr.mxu0 0.0
    %260 = vmatpush2.msra.mxu0 %v181
    %261 = vmatprep.subr.mxu0 0.0
    %262 = vmatpush2.msra.mxu0 %v180
    %263 = vmatprep.subr.mxu0 0.0
    %264 = vmatpush2.msra.mxu0 %v179
    %265 = vmatprep.subr.mxu0 0.0
    %266 = vmatpush2.msra.mxu0 %v178
    %267 = vmatprep.mubr.f32.mxu0 %v198
    %268 = vmatmul.mubr.f32.gmra.mxu0 %v141
    %v269 = vpop.f32.mrf.mxu0
    %v270 = vadd.f32 %v202, %v269
    %v271 = vpop.f32.mrf.mxu0
    %272 = vdwg.mxu0
    %v273 = vmul.f32 %v53, %v54
    %v274 = vlaneseq
    %v275 = vshrl.u32 %v274, 7
    %v276 = vsub.s32 0, %v275
    %v277 = vrot.slane %v273, %v276
    %v278 = vadd.f32 %v270, %v277
    %v279 = vmax.f32 %v278, 0.0
    %v280 = vld [vmem:[%s3] sm:$0xff]
    %v281 = vld [vmem:[%s3 + $0x8] sm:$0xff]
    %v282 = vld [vmem:[%s3 + $0x10] sm:$0xff]
    %v283 = vld [vmem:[%s3 + $0x18] sm:$0xff]
    %v284 = vld [vmem:[%s3 + $0x20] sm:$0xff]
    %v285 = vld [vmem:[%s3 + $0x28] sm:$0xff]
    %v286 = vld [vmem:[%s3 + $0x30] sm:$0xff]
    %v287 = vld [vmem:[%s3 + $0x38] sm:$0xff]
    %v288 = vld [vmem:[%s3 + $0x40] sm:$0xff]
    %v289 = vld [vmem:[%s3 + $0x48] sm:$0xff]
    %v290 = vld [vmem:[%s3 + $0x50] sm:$0xff]
    %v291 = vld [vmem:[%s3 + $0x58] sm:$0xff]
    %v292 = vld [vmem:[%s3 + $0x60] sm:$0xff]
    %v293 = vld [vmem:[%s3 + $0x68] sm:$0xff]
    %v294 = vld [vmem:[%s3 + $0x70] sm:$0xff]
    %v295 = vld [vmem:[%s3 + $0x78] sm:$0xff]
    %v296 = vld [vmem:[%s3 + $0x80] sm:$0xff]
    %v297 = vld [vmem:[%s3 + $0x88] sm:$0xff]
    %v298 = vld [vmem:[%s3 + $0x90] sm:$0xff]
    %v299 = vld [vmem:[%s3 + $0x98] sm:$0xff]
    %v300 = vld [vmem:[%s3 + $0xa0] sm:$0xff]
    %v301 = vld [vmem:[%s3 + $0xa8] sm:$0xff]
    %v302 = vld [vmem:[%s3 + $0xb0] sm:$0xff]
    %v303 = vld [vmem:[%s3 + $0xb8] sm:$0xff]
    %v304 = vld [vmem:[%s3 + $0xc0] sm:$0xff]
    %v305 = vld [vmem:[%s3 + $0xc8] sm:$0xff]
    %v306 = vld [vmem:[%s3 + $0xd0] sm:$0xff]
    %v307 = vld [vmem:[%s3 + $0xd8] sm:$0xff]
    %v308 = vld [vmem:[%s3 + $0xe0] sm:$0xff]
    %v309 = vld [vmem:[%s3 + $0xe8] sm:$0xff]
    %v310 = vld [vmem:[%s3 + $0xf0] sm:$0xff]
    %v311 = vld [vmem:[%s3 + $0xf8] sm:$0xff]
    %v312 = vlaneseq
    %v313 = vshrl.u32 %v312, 7
    %v314 = vsub.s32 0, %v313
    %v315 = vrot.slane %v56, %v314
    %v316 = vmul.f32 %v296, %v315
    %v317 = vmul.f32 %v297, %v315
    %v318 = vmul.f32 %v298, %v315
    %v319 = vmul.f32 %v299, %v315
    %v320 = vmul.f32 %v300, %v315
    %v321 = vmul.f32 %v301, %v315
    %v322 = vmul.f32 %v302, %v315
    %v323 = vmul.f32 %v303, %v315
    %v324 = vmul.f32 %v304, %v315
    %v325 = vmul.f32 %v305, %v315
    %v326 = vmul.f32 %v306, %v315
    %v327 = vmul.f32 %v307, %v315
    %v328 = vmul.f32 %v308, %v315
    %v329 = vmul.f32 %v309, %v315
    %v330 = vmul.f32 %v310, %v315
    %v331 = vmul.f32 %v311, %v315
    %v332 = vlaneseq
    %v333 = vshrl.u32 %v332, 7
    %v334 = vsub.s32 0, %v333
    %v335 = vrot.slane %v55, %v334
    %v336 = vmul.f32 %v279, %v335
    %v337 = vlaneseq
    %v338 = vshrl.u32 %v337, 7
    %v339 = vsub.s32 0, %v338
    %v340 = vrot.slane %v57, %v339
    %341 = vmatprep.subr.mxu0 0.0
    %342 = vmatpush1.msra.mxu0 %v295
    %343 = vmatprep.subr.mxu0 0.0
    %344 = vmatpush1.msra.mxu0 %v294
    %345 = vmatprep.subr.mxu0 0.0
    %346 = vmatpush1.msra.mxu0 %v293
    %347 = vmatprep.subr.mxu0 0.0
    %348 = vmatpush1.msra.mxu0 %v292
    %349 = vmatprep.subr.mxu0 0.0
    %350 = vmatpush1.msra.mxu0 %v291
    %351 = vmatprep.subr.mxu0 0.0
    %352 = vmatpush1.msra.mxu0 %v290
    %353 = vmatprep.subr.mxu0 0.0
    %354 = vmatpush1.msra.mxu0 %v289
    %355 = vmatprep.subr.mxu0 0.0
    %356 = vmatpush1.msra.mxu0 %v288
    %357 = vmatprep.subr.mxu0 0.0
    %358 = vmatpush1.msra.mxu0 %v287
    %359 = vmatprep.subr.mxu0 0.0
    %360 = vmatpush1.msra.mxu0 %v286
    %361 = vmatprep.subr.mxu0 0.0
    %362 = vmatpush1.msra.mxu0 %v285
    %363 = vmatprep.subr.mxu0 0.0
    %364 = vmatpush1.msra.mxu0 %v284
    %365 = vmatprep.subr.mxu0 0.0
    %366 = vmatpush1.msra.mxu0 %v283
    %367 = vmatprep.subr.mxu0 0.0
    %368 = vmatpush1.msra.mxu0 %v282
    %369 = vmatprep.subr.mxu0 0.0
    %370 = vmatpush1.msra.mxu0 %v281
    %371 = vmatprep.subr.mxu0 0.0
    %372 = vmatpush1.msra.mxu0 %v280
    %373 = vmatprep.subr.mxu0 0.0
    %374 = vmatpush2.msra.mxu0 %v331
    %375 = vmatprep.subr.mxu0 0.0
    %376 = vmatpush2.msra.mxu0 %v330
    %377 = vmatprep.subr.mxu0 0.0
    %378 = vmatpush2.msra.mxu0 %v329
    %379 = vmatprep.subr.mxu0 0.0
    %380 = vmatpush2.msra.mxu0 %v328
    %381 = vmatprep.subr.mxu0 0.0
    %382 = vmatpush2.msra.mxu0 %v327
    %383 = vmatprep.subr.mxu0 0.0
    %384 = vmatpush2.msra.mxu0 %v326
    %385 = vmatprep.subr.mxu0 0.0
    %386 = vmatpush2.msra.mxu0 %v325
    %387 = vmatprep.subr.mxu0 0.0
    %388 = vmatpush2.msra.mxu0 %v324
    %389 = vmatprep.subr.mxu0 0.0
    %390 = vmatpush2.msra.mxu0 %v323
    %391 = vmatprep.subr.mxu0 0.0
    %392 = vmatpush2.msra.mxu0 %v322
    %393 = vmatprep.subr.mxu0 0.0
    %394 = vmatpush2.msra.mxu0 %v321
    %395 = vmatprep.subr.mxu0 0.0
    %396 = vmatpush2.msra.mxu0 %v320
    %397 = vmatprep.subr.mxu0 0.0
    %398 = vmatpush2.msra.mxu0 %v319
    %399 = vmatprep.subr.mxu0 0.0
    %400 = vmatpush2.msra.mxu0 %v318
    %401 = vmatprep.subr.mxu0 0.0
    %402 = vmatpush2.msra.mxu0 %v317
    %403 = vmatprep.subr.mxu0 0.0
    %404 = vmatpush2.msra.mxu0 %v316
    %405 = vmatprep.mubr.f32.mxu0 %v336
    %406 = vmatmul.mubr.f32.gmra.mxu0 %v279
    %v407 = vpop.f32.mrf.mxu0
    %v408 = vadd.f32 %v340, %v407
    %v409 = vpop.f32.mrf.mxu0
    %410 = vdwg.mxu0
    %v411 = vmul.f32 %v58, %v59
    %v412 = vlaneseq
    %v413 = vshrl.u32 %v412, 7
    %v414 = vsub.s32 0, %v413
    %v415 = vrot.slane %v411, %v414
    %v416 = vadd.f32 %v408, %v415
    %vm417 = vcmask 25600
    %418 = vst.msk [vmem:[#allocation7] sm:$0x3] %vm417, %v416
    // Predicated region
    $region30: #{tpu_custom_call.1} parent=1 // pred_check
      _
    $region31: #{tpu_custom_call.1} parent=1 // pred_check_branch
      %420 = sbr.rel (0) target = $region33
    $region32: #{tpu_custom_call.1} parent=1 // pred_region
      %s422 = ssub.s32 32, 32
      %423 = vsyncadd [#allocation4], %s422
      %s425 = sshll.u32 [#allocation7], 4
      %s426 = int_to_ptr.vmem [resolvable:$true] %s425
      %428 = dma.vmem_to_hbm [thread:$0]  %s426, 32, %s5, [#allocation4]
    $region33: #{tpu_custom_call.1} parent=1 // pred_fallthru
      _
    // Predicated region
    $region34: #{tpu_custom_call.1} parent=1 // pred_check
      _
    $region35: #{tpu_custom_call.1} parent=1 // pred_check_branch
      %430 = sbr.rel (0) target = $region37
    $region36: #{tpu_custom_call.1} parent=1 // pred_region
      %431 = dma.done [#allocation4], 32
    $region37: #{tpu_custom_call.1} parent=1 // pred_fallthru
      _
    %432 = vsyncpa [#allocation3], 1
    %433 = vsyncpa [#allocation6], 1
    %434 = vsyncpa [#allocation4], 1

</llo_original>
